<compile_context>
chip_gen: v7x
topology: tpu7x:2x2x1
jax: 0.10.0
libtpu: 0.0.40
codegen_flags: <defaults>
</compile_context>

<pallas_src>
import functools

import jax
import jax.numpy as jnp
from jax.experimental import pallas as pl
from jax.experimental.pallas import tpu as pltpu

_N_CORES = 2            # v7x megacore split; harmless (sequential) on v5e / v6e.
_VMEM_LIMIT = 32 * 1024 * 1024


def _sublane_align(dtype) -> int:
    # f32 -> 8, bf16 -> 16, int8/fp8 -> 32 sublanes per native tile.
    return 8 * max(1, 4 // jnp.dtype(dtype).itemsize)


def _partial_to_block(partial):
    """Place a scalar partial sum at [0,0] of an (8,128) f32 output block."""
    r = jax.lax.broadcasted_iota(jnp.int32, (8, 128), 0)
    l = jax.lax.broadcasted_iota(jnp.int32, (8, 128), 1)
    return jnp.where((r == 0) & (l == 0), partial, 0.0).astype(jnp.float32)


# ---------------------------------------------------------------------------
# Cross-entropy (mean over the batch), tiled over N with a resident accumulator
# ---------------------------------------------------------------------------
def _ce_kernel(logits_ref, labels_ref, out_ref, acc_ref, *, n_total):
    c = pl.program_id(0)
    i = pl.program_id(1)
    tiles_per_core = pl.num_programs(1)
    block = c * tiles_per_core + i          # UNclamped logical tile id (for mask)

    @pl.when(i == 0)
    def _():
        acc_ref[...] = jnp.zeros_like(acc_ref)

    logits = logits_ref[...].astype(jnp.float32)       # (tn, C) per-tile cast
    tn, nc = logits.shape

    # numerically stable logsumexp over the class axis
    m = jnp.max(logits, axis=-1, keepdims=True)
    lse = jnp.log(jnp.sum(jnp.exp(logits - m), axis=-1, keepdims=True)) + m

    # gather logit at the label index (lane select, no one-hot float multiply)
    col = jax.lax.broadcasted_iota(jnp.int32, (tn, nc), 1)
    label_logit = jnp.sum(
        jnp.where(col == labels_ref[...], logits, 0.0), axis=-1, keepdims=True)

    nll = lse - label_logit                             # (tn, 1)

    # mask rows that fall outside the true batch (pad / phantom tiles)
    row = block * tn + jax.lax.broadcasted_iota(jnp.int32, (tn, 1), 0)
    nll = jnp.where(row < n_total, nll, 0.0)

    acc_ref[...] += nll

    @pl.when(i == tiles_per_core - 1)
    def _():
        # mean divisor is the GLOBAL batch size, not the per-tile row count
        partial = jnp.sum(acc_ref[...]) / n_total
        out_ref[...] = _partial_to_block(partial)


def cross_entropy_pallas(logits, labels, *, tile_n=512):
    n, c = logits.shape
    labels2d = labels.astype(jnp.int32).reshape(n, 1)

    align = _sublane_align(logits.dtype)
    # Minimal host pad (< align rows of zeros) so every tile is sublane-aligned;
    # padded rows are masked in-kernel against the true n.
    pad = (-n) % align
    if pad:
        logits = jnp.pad(logits, ((0, pad), (0, 0)))
        labels2d = jnp.pad(labels2d, ((0, pad), (0, 0)))
    n_pad = n + pad

    # Keep each logits buffer <= ~6 MiB (double-buffered stays well inside the
    # 32 MiB scoped VMEM on v7x/v6e and the 16 MiB default on v5e).
    bytes_per_row = c * jnp.dtype(logits.dtype).itemsize
    vmem_rows = max(align, (6 * 1024 * 1024 // bytes_per_row) // align * align)
    tn = max(align, (min(tile_n, vmem_rows, n_pad) // align) * align)

    n_blocks = pl.cdiv(n_pad, tn)
    tiles_per_core = pl.cdiv(n_blocks, _N_CORES)

    def blk(ci, i):     # clamp so phantom tiles re-read a real block (masked)
        return jnp.minimum(ci * tiles_per_core + i, n_blocks - 1)

    kernel = functools.partial(_ce_kernel, n_total=n)
    out = pl.pallas_call(
        kernel,
        out_shape=jax.ShapeDtypeStruct((_N_CORES * 8, 128), jnp.float32),
        grid=(_N_CORES, tiles_per_core),
        in_specs=[
            pl.BlockSpec((tn, c), lambda ci, i: (blk(ci, i), 0)),
            pl.BlockSpec((tn, 1), lambda ci, i: (blk(ci, i), 0)),
        ],
        out_specs=pl.BlockSpec((8, 128), lambda ci, i: (ci, 0)),
        scratch_shapes=[pltpu.VMEM((tn, 1), jnp.float32)],
        compiler_params=pltpu.CompilerParams(
            dimension_semantics=("parallel", "arbitrary"),
            vmem_limit_bytes=_VMEM_LIMIT),
    )(logits, labels2d)
    return jnp.sum(out)     # sum of per-core partials (already mean-scaled)


# ---------------------------------------------------------------------------
# scale * sum(params^2) with large tiles, vector accumulator, in-kernel masking
# ---------------------------------------------------------------------------
def _sumsq_kernel(p_ref, out_ref, acc_ref, *, n_rows, scale):
    c = pl.program_id(0)
    i = pl.program_id(1)
    tiles_per_core = pl.num_programs(1)
    block = c * tiles_per_core + i          # UNclamped logical tile id

    @pl.when(i == 0)
    def _():
        acc_ref[...] = jnp.zeros_like(acc_ref)

    p = p_ref[...].astype(jnp.float32)      # (tile_rows, 128) per-tile cast
    tile_rows = p.shape[0]
    row = block * tile_rows + jax.lax.broadcasted_iota(jnp.int32, p.shape, 0)
    p = jnp.where(row < n_rows, p, 0.0)     # zero ragged / phantom rows

    acc_ref[...] += p * p                   # pure VPU FMA; no per-step reduce

    @pl.when(i == tiles_per_core - 1)
    def _():
        partial = scale * jnp.sum(acc_ref[...])   # single cross-lane reduce
        out_ref[...] = _partial_to_block(partial)


def sum_squares_pallas(params, *, tile_rows=2048, scale=1.0):
    p = params.reshape(-1)                  # native dtype: no astype copy
    align = _sublane_align(p.dtype)
    # Only pad up to the minimal (align,128) hardware tile (<= align*128-1
    # zeros); ragged / phantom rows beyond that are masked in-kernel.
    pad = (-p.shape[0]) % (align * 128)
    if pad:
        p = jnp.pad(p, (0, pad))
    rows = p.shape[0] // 128
    p2d = p.reshape(rows, 128)              # free row-major reshape

    tile_rows = max(align, (min(tile_rows, rows) // align) * align)
    n_blocks = pl.cdiv(rows, tile_rows)
    tiles_per_core = pl.cdiv(n_blocks, _N_CORES)

    def blk(ci, i):     # clamp so phantom tiles re-read a real block (masked)
        return jnp.minimum(ci * tiles_per_core + i, n_blocks - 1)

    kernel = functools.partial(_sumsq_kernel, n_rows=rows, scale=float(scale))
    out = pl.pallas_call(
        kernel,
        out_shape=jax.ShapeDtypeStruct((_N_CORES * 8, 128), jnp.float32),
        grid=(_N_CORES, tiles_per_core),
        in_specs=[pl.BlockSpec((tile_rows, 128), lambda ci, i: (blk(ci, i), 0))],
        out_specs=pl.BlockSpec((8, 128), lambda ci, i: (ci, 0)),
        scratch_shapes=[pltpu.VMEM((tile_rows, 128), jnp.float32)],
        compiler_params=pltpu.CompilerParams(
            dimension_semantics=("parallel", "arbitrary"),
            vmem_limit_bytes=_VMEM_LIMIT),
    )(p2d)
    return jnp.sum(out)     # sum of per-core (already alpha/2-scaled) partials


# ---------------------------------------------------------------------------
# L2Loss forward
# ---------------------------------------------------------------------------
def l2_loss_forward(logits, labels, params, alpha, *, ce_tile_n=512,
                    sq_tile_rows=2048):
    nll = cross_entropy_pallas(logits, labels, tile_n=ce_tile_n)
    penalty = sum_squares_pallas(params, tile_rows=sq_tile_rows,
                                 scale=alpha / 2.0)
    return {"loss": nll + penalty, "nll": nll}


# ---------------------------------------------------------------------------
# Demo / self-check
# ---------------------------------------------------------------------------
def _reference(logits, labels, params, alpha):
    lg = logits.astype(jnp.float32)
    lse = jax.nn.logsumexp(lg, axis=-1)
    n = lg.shape[0]
    nll = jnp.mean(lse - lg[jnp.arange(n), labels])
    loss = nll + alpha / 2.0 * jnp.sum(params.astype(jnp.float32) ** 2)
    return loss, nll


if __name__ == "__main__":
    key = jax.random.PRNGKey(0)
    k1, k2, k3, k4, k5, k6 = jax.random.split(key, 6)

    # --- test 1: tiny shapes (single tile per core, phantom tile on core 1) ---
    N, C, P = 8, 32, 1000
    alpha = 0.1
    logits = jax.random.normal(k1, (N, C), dtype=jnp.float32)
    labels = jax.random.randint(k2, (N,), 0, C, dtype=jnp.int32)
    params = jax.random.normal(k3, (P,), dtype=jnp.float32)

    out = l2_loss_forward(logits, labels, params, alpha)
    jax.block_until_ready(out["loss"])
    jax.block_until_ready(out["nll"])
    ref_loss, ref_nll = _reference(logits, labels, params, alpha)
    assert jnp.allclose(out["nll"], ref_nll, rtol=1e-5, atol=1e-5)
    assert jnp.allclose(out["loss"], ref_loss, rtol=1e-5, atol=1e-5)

    # --- test 2: multi-tile grid, bf16 inputs, batch-pad + masking paths ---
    N2, C2, P2 = 40, 96, 5000
    alpha2 = 0.05
    logits2 = jax.random.normal(k4, (N2, C2), dtype=jnp.bfloat16)
    labels2 = jax.random.randint(k5, (N2,), 0, C2, dtype=jnp.int32)
    params2 = jax.random.normal(k6, (P2,), dtype=jnp.bfloat16)

    out2 = l2_loss_forward(logits2, labels2, params2, alpha2,
                           ce_tile_n=16, sq_tile_rows=16)
    jax.block_until_ready(out2["loss"])
    ref_loss2, ref_nll2 = _reference(logits2, labels2, params2, alpha2)
    assert jnp.allclose(out2["nll"], ref_nll2, rtol=1e-4, atol=1e-4)
    assert jnp.allclose(out2["loss"], ref_loss2, rtol=1e-4, atol=1e-4)

    print("KERNEL_OK")
</pallas_src>

<mosaic_0001>
module attributes {stable_mosaic.version = 11 : i64} {
  func.func @_ce_kernel(%arg0: i32, %arg1: i32, %arg2: memref<8x32xf32, #tpu.memory_space<vmem>>, %arg3: memref<8x1xi32, #tpu.memory_space<vmem>>, %arg4: memref<8x128xf32, #tpu.memory_space<vmem>>, %arg5: memref<8x1xf32, #tpu.memory_space<vmem>>) attributes {dimension_semantics = [#tpu.dimension_semantics<parallel>, #tpu.dimension_semantics<arbitrary>], iteration_bounds = array<i64: 2, 1>, scalar_prefetch = 0 : i64, scratch_operands = 1 : i64, tpu.core_type = #tpu.core_type<tc>, window_params = [{transform_indices = @transform_0, window_bounds = array<i64: 8, 32>}, {transform_indices = @transform_1, window_bounds = array<i64: 8, 1>}, {transform_indices = @transform_2, window_bounds = array<i64: 8, 128>}]} {
    %c1_i32 = arith.constant 1 : i32
    %0 = arith.muli %arg0, %c1_i32 : i32
    %1 = arith.addi %0, %arg1 : i32
    %c0_i32 = arith.constant 0 : i32
    %2 = arith.cmpi eq, %arg1, %c0_i32 : i32
    %3 = arith.extui %2 : i1 to i32
    %c0_i32_0 = arith.constant 0 : i32
    %4 = arith.cmpi ne, %3, %c0_i32_0 : i32
    scf.if %4 {
      %cst_15 = arith.constant 0.000000e+00 : f32
      %38 = vector.broadcast %cst_15 : f32 to vector<8x1xf32>
      %c0_16 = arith.constant 0 : index
      %c0_17 = arith.constant 0 : index
      %39 = vector.load %arg5[%c0_16, %c0_17] : memref<8x1xf32, #tpu.memory_space<vmem>>, vector<8x1xf32>
      tpu.vector_store %arg5[%c0_16, %c0_17], %38 {strides = array<i32>} : memref<8x1xf32, #tpu.memory_space<vmem>>, vector<8x1xf32>,
    } else {
    }
    %c0 = arith.constant 0 : index
    %c0_1 = arith.constant 0 : index
    %5 = vector.load %arg2[%c0, %c0_1] : memref<8x32xf32, #tpu.memory_space<vmem>>, vector<8x32xf32>
    %cst = arith.constant dense<0xFF800000> : vector<8xf32>
    %6 = vector.multi_reduction <maximumf>, %5, %cst [1] : vector<8x32xf32> to vector<8xf32>
    %7 = vector.shape_cast %6 : vector<8xf32> to vector<8x1xf32>
    %8 = vector.broadcast %7 : vector<8x1xf32> to vector<8x32xf32>
    %9 = arith.subf %5, %8 : vector<8x32xf32>
    %10 = math.exp %9 : vector<8x32xf32>
    %cst_2 = arith.constant dense<0.000000e+00> : vector<8xf32>
    %11 = vector.multi_reduction <add>, %10, %cst_2 [1] : vector<8x32xf32> to vector<8xf32>
    %12 = vector.shape_cast %11 : vector<8xf32> to vector<8x1xf32>
    %13 = math.log %12 : vector<8x1xf32>
    %14 = arith.addf %13, %7 : vector<8x1xf32>
    %15 = tpu.iota {dimensions = array<i32: 1>} : vector<8x32xi32>
    %c0_3 = arith.constant 0 : index
    %c0_4 = arith.constant 0 : index
    %16 = vector.load %arg3[%c0_3, %c0_4] : memref<8x1xi32, #tpu.memory_space<vmem>>, vector<8x1xi32>
    %17 = vector.broadcast %16 : vector<8x1xi32> to vector<8x32xi32>
    %18 = arith.cmpi eq, %15, %17 : vector<8x32xi32>
    %cst_5 = arith.constant 0.000000e+00 : f32
    %19 = vector.broadcast %cst_5 : f32 to vector<8x32xf32>
    %20 = arith.select %18, %5, %19 : vector<8x32xi1>, vector<8x32xf32>
    %cst_6 = arith.constant dense<0.000000e+00> : vector<8xf32>
    %21 = vector.multi_reduction <add>, %20, %cst_6 [1] : vector<8x32xf32> to vector<8xf32>
    %22 = vector.shape_cast %21 : vector<8xf32> to vector<8x1xf32>
    %23 = arith.subf %14, %22 : vector<8x1xf32>
    %c8_i32 = arith.constant 8 : i32
    %24 = arith.muli %1, %c8_i32 : i32
    %25 = tpu.iota {dimensions = array<i32: 0>} : vector<8x1xi32>
    %26 = vector.broadcast %24 : i32 to vector<8x1xi32>
    %27 = arith.addi %26, %25 : vector<8x1xi32>
    %c8_i32_7 = arith.constant 8 : i32
    %28 = vector.broadcast %c8_i32_7 : i32 to vector<8x1xi32>
    %29 = arith.cmpi slt, %27, %28 : vector<8x1xi32>
    %cst_8 = arith.constant 0.000000e+00 : f32
    %30 = vector.broadcast %cst_8 : f32 to vector<8x1xf32>
    %31 = arith.select %29, %23, %30 : vector<8x1xi1>, vector<8x1xf32>
    %c0_9 = arith.constant 0 : index
    %c0_10 = arith.constant 0 : index
    %32 = vector.load %arg5[%c0_9, %c0_10] : memref<8x1xf32, #tpu.memory_space<vmem>>, vector<8x1xf32>
    %33 = arith.addf %32, %31 : vector<8x1xf32>
    %c0_11 = arith.constant 0 : index
    %c0_12 = arith.constant 0 : index
    %34 = vector.load %arg5[%c0_11, %c0_12] : memref<8x1xf32, #tpu.memory_space<vmem>>, vector<8x1xf32>
    tpu.vector_store %arg5[%c0_11, %c0_12], %33 {strides = array<i32>} : memref<8x1xf32, #tpu.memory_space<vmem>>, vector<8x1xf32>,
    %c0_i32_13 = arith.constant 0 : i32
    %35 = arith.cmpi eq, %arg1, %c0_i32_13 : i32
    %36 = arith.extui %35 : i1 to i32
    %c0_i32_14 = arith.constant 0 : i32
    %37 = arith.cmpi ne, %36, %c0_i32_14 : i32
    scf.if %37 {
      %c0_15 = arith.constant 0 : index
      %c0_16 = arith.constant 0 : index
      %38 = vector.load %arg5[%c0_15, %c0_16] : memref<8x1xf32, #tpu.memory_space<vmem>>, vector<8x1xf32>
      %39 = vector.shape_cast %38 : vector<8x1xf32> to vector<1x8x1xf32>
      %cst_17 = arith.constant dense<0.000000e+00> : vector<1xf32>
      %40 = vector.multi_reduction <add>, %39, %cst_17 [1, 2] : vector<1x8x1xf32> to vector<1xf32>
      %41 = vector.shape_cast %40 : vector<1xf32> to vector<1x1x1xf32>
      %42 = vector.extract %41[0, 0, 0] : f32 from vector<1x1x1xf32>
      %cst_18 = arith.constant 8.000000e+00 : f32
      %43 = arith.divf %42, %cst_18 : f32
      %44 = tpu.iota {dimensions = array<i32: 0>} : vector<8x128xi32>
      %45 = tpu.iota {dimensions = array<i32: 1>} : vector<8x128xi32>
      %c0_i32_19 = arith.constant 0 : i32
      %46 = vector.broadcast %c0_i32_19 : i32 to vector<8x128xi32>
      %47 = arith.cmpi eq, %44, %46 : vector<8x128xi32>
      %c0_i32_20 = arith.constant 0 : i32
      %48 = vector.broadcast %c0_i32_20 : i32 to vector<8x128xi32>
      %49 = arith.cmpi eq, %45, %48 : vector<8x128xi32>
      %50 = arith.andi %47, %49 : vector<8x128xi1>
      %cst_21 = arith.constant 0.000000e+00 : f32
      %51 = vector.broadcast %43 : f32 to vector<8x128xf32>
      %52 = vector.broadcast %cst_21 : f32 to vector<8x128xf32>
      %53 = arith.select %50, %51, %52 : vector<8x128xi1>, vector<8x128xf32>
      %c0_22 = arith.constant 0 : index
      %c0_23 = arith.constant 0 : index
      %54 = vector.load %arg4[%c0_22, %c0_23] : memref<8x128xf32, #tpu.memory_space<vmem>>, vector<8x128xf32>
      tpu.vector_store %arg4[%c0_22, %c0_23], %53 {strides = array<i32>} : memref<8x128xf32, #tpu.memory_space<vmem>>, vector<8x128xf32>,
    } else {
    }
    return
  }
  func.func @transform_0(%arg0: i32, %arg1: i32) -> (i32, i32) {
    %c1_i32 = arith.constant 1 : i32
    %0 = arith.muli %arg0, %c1_i32 : i32
    %1 = arith.addi %0, %arg1 : i32
    %c0_i32 = arith.constant 0 : i32
    %2 = arith.minsi %1, %c0_i32 : i32
    %c0_i32_0 = arith.constant 0 : i32
    %c0_i32_1 = arith.constant 0 : i32
    return %2, %c0_i32_0 : i32, i32
  }
  func.func @transform_1(%arg0: i32, %arg1: i32) -> (i32, i32) {
    %c1_i32 = arith.constant 1 : i32
    %0 = arith.muli %arg0, %c1_i32 : i32
    %1 = arith.addi %0, %arg1 : i32
    %c0_i32 = arith.constant 0 : i32
    %2 = arith.minsi %1, %c0_i32 : i32
    %c0_i32_0 = arith.constant 0 : i32
    %c0_i32_1 = arith.constant 0 : i32
    return %2, %c0_i32_0 : i32, i32
  }
  func.func @transform_2(%arg0: i32, %arg1: i32) -> (i32, i32) {
    %c0_i32 = arith.constant 0 : i32
    %c0_i32_0 = arith.constant 0 : i32
    return %arg0, %c0_i32 : i32, i32
  }
}

</mosaic_0001>

<llo_original>
// kernel: tpu_custom_call.1
$region0: #{tpu_custom_call.1}
  #allocation0 [shape = 'u32[]', space=smem, size = 0x4, offset = 0x4, fixed_abs, tag = 'smem constant byte address 0x4 - core index']
  #allocation1 [shape = 'u32[144,128]{1,0:T(1,128)}', space=vmem, size = 0x12000, scoped, tag = 'internal scratch']
  #allocation2 [shape = 'f32[8,1]{1,0:T(8,128)}', space=vmem, size = 0x1000, scoped, tag = 'scratch operand']
  %s0 = inlined_call_operand.vmem [shape: f32[8,32], index: 0, kind: input, shape index: {}]
  %s1 = inlined_call_operand.vmem [shape: s32[8,1], index: 1, kind: input, shape index: {}]
  %s2 = inlined_call_operand.hbm [shape: f32[16,128], index: 2, kind: output, shape index: {}]
  %s3 = sld [smem:[#allocation0]]
  $region49: #{tpu_custom_call.1} parent=0
    _
  %s5 = ssub.s32 1, %s3
  %s6 = scalar_select 0, %s5, %s3
  $region1: #{tpu_custom_call.1} parent=0
    #allocation3 [shape = 'u8[8192]{0}', space=vmem, size = 0x2000, scoped, tag = 'output window, operand 0']
    #allocation4 [shape = 's32[2]{0}', space=sflag, size = 0x8, scoped, tag = 'scoped memory for tpu_custom_call.1']
    %7 = vsyncpa [#allocation4], 0
    %s8 = scalar_lea.sflag [#allocation4], 1
    %9 = vsyncpa %s8, 0
    loop: start=0, step=1, limit=4
    $region2: #{tpu_custom_call.1} parent=1 // loop_pre_header
      _
    $region3: #{tpu_custom_call.1} parent=1 // loop_header
      %s11 = sphi 0, %s15
      %p12 = scmp.ge.s32.totalorder %s11, 4
      %s18 = sphi 0, %s30
      %s19 = sphi 0, %s26
      %s20 = sphi 0, %s18
      %s21 = sphi 0, %s19
      %s22 = sphi 0, %s20
      %s23 = sphi 0, %s21
      %s39 = sphi 0, %s41
      %s42 = sphi 0, %s39
      %s43 = sphi 0, %s42
      %s59 = sphi 0, %s43
      %s71 = sphi 0, %s73
      %s74 = sphi 0, %s71
      %s75 = sphi 0, %s74
      %s91 = sphi 0, %s75
      %s97 = sphi 0, %s99
      %s100 = sphi 0, %s97
      %s101 = sphi 0, %s100
      %s117 = sphi 0, %s101
    $region4: #{tpu_custom_call.1} parent=1 // loop_header_branch
      %14 = sbr.rel (%p12) target = $region8
    $region5: #{tpu_custom_call.1} parent=1 // loop_body
      %s16 = ssub.s32 %s11, 1
      %s17 = ssub.s32 %s11, 2
      %s24 = sadd.s32 1, %s19
      %p25 = scmp.ge.s32.totalorder %s24, 1
      %s26 = scalar_select %p25, 0, %s24
      %s27 = sadd.s32 1, %s18
      %s28 = scalar_select %p25, %s27, %s18
      %p29 = scmp.ge.s32.totalorder %s28, 2
      %s30 = scalar_select %p29, 0, %s28
      %s31 = sadd.s32 %s18, %s19
      %p32 = scmp.lt.s32.totalorder %s31, 0
      %s33 = scalar_select %p32, %s31, 0
      %s34 = sadd.s32 %s30, %s26
      %p35 = scmp.lt.s32.totalorder %s34, 0
      %s36 = scalar_select %p35, %s34, 0
      %s37 = ssub.s32 %s33, %s36
      %p38 = scmp.eq.s32.totalorder %s37, 0
      %s40 = sadd.s32 %s39, 1
      %s41 = scalar_select %p38, %s39, %s40
      %p44 = pneg %p38
      %p45 = scmp.eq.s32.totalorder %s11, 1
      %p46 = por %p44, %p45
      %p47 = scmp.ne.s32.totalorder %s39, %s42
      %p48 = scmp.eq.s32.totalorder %s11, 0
      %p49 = por %p47, %p48
      %p50 = scmp.ne.s32.totalorder %s39, %s42
      %p51 = scmp.eq.s32.totalorder %s16, 1
      %p52 = por %p50, %p51
      %p53 = scmp.ne.s32.totalorder %s42, %s43
      %p54 = scmp.eq.s32.totalorder %s16, 0
      %p55 = por %p53, %p54
      %p56 = scmp.ne.s32.totalorder %s42, %s43
      %p57 = scmp.eq.s32.totalorder %s17, 1
      %p58 = por %p56, %p57
      %p60 = scmp.ne.s32.totalorder %s43, %s59
      %p61 = scmp.eq.s32.totalorder %s17, 0
      %p62 = por %p60, %p61
      %s63 = sadd.s32 %s18, %s19
      %p64 = scmp.lt.s32.totalorder %s63, 0
      %s65 = scalar_select %p64, %s63, 0
      %s66 = sadd.s32 %s30, %s26
      %p67 = scmp.lt.s32.totalorder %s66, 0
      %s68 = scalar_select %p67, %s66, 0
      %s69 = ssub.s32 %s65, %s68
      %p70 = scmp.eq.s32.totalorder %s69, 0
      %s72 = sadd.s32 %s71, 1
      %s73 = scalar_select %p70, %s71, %s72
      %p76 = pneg %p70
      %p77 = scmp.eq.s32.totalorder %s11, 1
      %p78 = por %p76, %p77
      %p79 = scmp.ne.s32.totalorder %s71, %s74
      %p80 = scmp.eq.s32.totalorder %s11, 0
      %p81 = por %p79, %p80
      %p82 = scmp.ne.s32.totalorder %s71, %s74
      %p83 = scmp.eq.s32.totalorder %s16, 1
      %p84 = por %p82, %p83
      %p85 = scmp.ne.s32.totalorder %s74, %s75
      %p86 = scmp.eq.s32.totalorder %s16, 0
      %p87 = por %p85, %p86
      %p88 = scmp.ne.s32.totalorder %s74, %s75
      %p89 = scmp.eq.s32.totalorder %s17, 1
      %p90 = por %p88, %p89
      %p92 = scmp.ne.s32.totalorder %s75, %s91
      %p93 = scmp.eq.s32.totalorder %s17, 0
      %p94 = por %p92, %p93
      %s95 = ssub.s32 %s18, %s30
      %p96 = scmp.eq.s32.totalorder %s95, 0
      %s98 = sadd.s32 %s97, 1
      %s99 = scalar_select %p96, %s97, %s98
      %p102 = pneg %p96
      %p103 = scmp.eq.s32.totalorder %s11, 1
      %p104 = por %p102, %p103
      %p105 = scmp.ne.s32.totalorder %s97, %s100
      %p106 = scmp.eq.s32.totalorder %s11, 0
      %p107 = por %p105, %p106
      %p108 = scmp.ne.s32.totalorder %s97, %s100
      %p109 = scmp.eq.s32.totalorder %s16, 1
      %p110 = por %p108, %p109
      %p111 = scmp.ne.s32.totalorder %s100, %s101
      %p112 = scmp.eq.s32.totalorder %s16, 0
      %p113 = por %p111, %p112
      %p114 = scmp.ne.s32.totalorder %s100, %s101
      %p115 = scmp.eq.s32.totalorder %s17, 1
      %p116 = por %p114, %p115
      %p118 = scmp.ne.s32.totalorder %s101, %s117
      %p119 = scmp.eq.s32.totalorder %s17, 0
      %p120 = por %p118, %p119
      %p121 = scmp.le.s32.totalorder 1, %s11
      %p122 = scmp.lt.s32.totalorder %s11, 3
      %p123 = pnand %p121, %p122
      %p124 = pneg %p123
      // Predicated region
      $region9: #{tpu_custom_call.1} parent=5 // pred_check
        _
      $region10: #{tpu_custom_call.1} parent=5 // pred_check_branch
        %126 = sbr.rel (%p123) target = $region12
      $region11: #{tpu_custom_call.1} parent=5 // pred_region
        %s127 = ssub.s32 %s11, 1
      $region12: #{tpu_custom_call.1} parent=5 // pred_fallthru
        _
      %p128 = scmp.lt.s32.totalorder %s11, 2
      // Predicated region
      $region13: #{tpu_custom_call.1} parent=5 // pred_check
        %p129 = pneg %p128
      $region14: #{tpu_custom_call.1} parent=5 // pred_check_branch
        %131 = sbr.rel (%p129) target = $region16
      $region15: #{tpu_custom_call.1} parent=5 // pred_region
        // Predicated region
        $region17: #{tpu_custom_call.1} parent=15 // pred_check
          %p132 = pneg %p49
        $region18: #{tpu_custom_call.1} parent=15 // pred_check_branch
          %134 = sbr.rel (%p132) target = $region20
        $region19: #{tpu_custom_call.1} parent=15 // pred_region
          %s135 = sadd.s32 %s18, %s19
          %p136 = scmp.lt.s32.totalorder %s135, 0
          %s137 = scalar_select %p136, %s135, 0
          %p138 = scmp.lt.s32.totalorder %s137, 0
          %s139 = scalar_select %p138, %s137, 0
          %s140 = smul.addr %s139, 8
          %s141 = scalar_lea.vmem %s0, %s140
          %s142 = sadd.s32 %s18, %s19
          %p143 = scmp.lt.s32.totalorder %s142, 0
          %s144 = scalar_select %p143, %s142, 0
        $region20: #{tpu_custom_call.1} parent=15 // pred_fallthru
          _
        // Predicated region
        $region21: #{tpu_custom_call.1} parent=15 // pred_check
          %p145 = pneg %p81
        $region22: #{tpu_custom_call.1} parent=15 // pred_check_branch
          %147 = sbr.rel (%p145) target = $region24
        $region23: #{tpu_custom_call.1} parent=15 // pred_region
          %s148 = sadd.s32 %s18, %s19
          %p149 = scmp.lt.s32.totalorder %s148, 0
          %s150 = scalar_select %p149, %s148, 0
          %p151 = scmp.lt.s32.totalorder %s150, 0
          %s152 = scalar_select %p151, %s150, 0
          %s153 = smul.addr %s152, 8
          %s154 = scalar_lea.vmem %s1, %s153
          %s155 = sadd.s32 %s18, %s19
          %p156 = scmp.lt.s32.totalorder %s155, 0
          %s157 = scalar_select %p156, %s155, 0
        $region24: #{tpu_custom_call.1} parent=15 // pred_fallthru
          _
      $region16: #{tpu_custom_call.1} parent=5 // pred_fallthru
        _
      %p158 = scmp.le.s32.totalorder 1, %s11
      %p159 = scmp.lt.s32.totalorder %s11, 3
      %p160 = pnand %p158, %p159
      %p161 = pneg %p160
      // Predicated region
      $region25: #{tpu_custom_call.1} parent=5 // pred_check
        _
      $region26: #{tpu_custom_call.1} parent=5 // pred_check_branch
        %163 = sbr.rel (%p160) target = $region28
      $region27: #{tpu_custom_call.1} parent=5 // pred_region
        %s164 = ssub.s32 %s11, 1
        %s165 = sadd.s32 %s20, %s21
        %p166 = scmp.lt.s32.totalorder %s165, 0
        %s167 = scalar_select %p166, %s165, 0
        %p168 = scmp.lt.s32.totalorder %s167, 0
        %s169 = scalar_select %p168, %s167, 0
        %s170 = smul.addr %s169, 8
        %s171 = scalar_lea.vmem %s0, %s170
        %p172 = pneg %p55
        %p173 = pneg %p52
        %s174 = sadd.s32 %s20, %s21
        %p175 = scmp.lt.s32.totalorder %s174, 0
        %s176 = scalar_select %p175, %s174, 0
        %p177 = scmp.lt.s32.totalorder %s176, 0
        %s178 = scalar_select %p177, %s176, 0
        %s179 = smul.addr %s178, 8
        %s180 = scalar_lea.vmem %s1, %s179
        %p181 = pneg %p87
        %p182 = pneg %p84
        %p183 = pneg %p113
        %p184 = pneg %p110
        %s185 = sand.u32 %s100, 1
        %s186 = scalar_lea.sflag [#allocation4], %s185
        %s187 = sand.u32 %s100, 1
        %s188 = smul.addr %s187, 8
        %s189 = scalar_lea.vmem [#allocation3], %s188
        %s190 = sadd.s32 %s20, %s21
        %p191 = scmp.lt.s32.totalorder %s190, 0
        %s192 = scalar_select %p191, %s190, 0
        %p193 = scmp.lt.s32.totalorder %s192, 0
        %s194 = scalar_select %p193, %s192, 0
        %s195 = smul.addr %s194, 8
        %s196 = scalar_lea.vmem %s0, %s195
        %s197 = sadd.s32 %s20, %s21
        %p198 = scmp.lt.s32.totalorder %s197, 0
        %s199 = scalar_select %p198, %s197, 0
        %s200 = sadd.s32 %s20, %s21
        %p201 = scmp.lt.s32.totalorder %s200, 0
        %s202 = scalar_select %p201, %s200, 0
        %p203 = scmp.lt.s32.totalorder %s202, 0
        %s204 = scalar_select %p203, %s202, 0
        %s205 = smul.addr %s204, 8
        %s206 = scalar_lea.vmem %s1, %s205
        %s207 = sadd.s32 %s20, %s21
        %p208 = scmp.lt.s32.totalorder %s207, 0
        %s209 = scalar_select %p208, %s207, 0
        %s210 = sadd.s32 %s20, %s21
        %p211 = scmp.eq.s32.totalorder %s21, 0
        // Predicated region
        $region29: #{tpu_custom_call.1} parent=27 // pred_check
          %p212 = pneg %p211
        $region30: #{tpu_custom_call.1} parent=27 // pred_check_branch
          %214 = sbr.rel (%p212) target = $region32
        $region31: #{tpu_custom_call.1} parent=27 // pred_region
          %vm215 = vcmask 7168
          %216 = vst.msk [vmem:[#allocation2] sm:$0xff] %vm215, 0.0
        $region32: #{tpu_custom_call.1} parent=27 // pred_fallthru
          _
        %v217 = vld [vmem:[%s196] sm:$0xff]
        %vm218 = vcmask 261120
        %v219 = vsel %vm218, %v217, -inf
        %220 = vmax.xlane.f32.xlu0 %v219
        %v221 = vpop.xlane.xlu0 %220
        %v222 = vsub.f32 %v217, %v221
        %v223 = vmul.f32 %v222, 1.442695
        %v224 = vpow.pop %v223
        %v225 = vsel %vm218, %v224, 0.0
        %226 = vadd.xlane.f32.xlu0 %v225
        %v227 = vpop.xlane.xlu0 %226
        %v228 = vlog2.pop %v227
        %v229 = vmul.f32 %v228, 0.6931472
        %v230 = vadd.f32 %v229, %v221
        %v231 = vlaneseq
        %v232 = vand.u32 %v231, 127
        %v233 = vld [vmem:[%s206] sm:$0xff]
        %234 = vset.pattern.permute.xlu0 0
        %235 = vperm.xlu0 %234, %v233
        %v236 = vpop.permute.xlu0 %235
        %vm237 = vcmp.eq.s32.totalorder %v232, %v236
        %v238 = vsel %vm237, %v217, 0.0
        %v239 = vsel %vm218, %v238, 0.0
        %240 = vadd.xlane.f32.xlu0 %v239
        %v241 = vpop.xlane.xlu0 %240
        %v242 = vsub.f32 %v230, %v241
        %s243 = smul.u32 %s210, 8
        %v244 = vlaneseq
        %v245 = vshrl.u32 %v244, 7
        %v246 = vstv %s243
        %v247 = vadd.s32 %v246, %v245
        %vm248 = vcmp.lt.s32.totalorder %v247, 8
        %v249 = vsel %vm248, %v242, 0.0
        %v250 = vld [vmem:[#allocation2] sm:$0xff]
        %v251 = vadd.f32 %v250, %v249
        %vm252 = vcmask 7168
        %253 = vst.msk [vmem:[#allocation2] sm:$0xff] %vm252, %v251
        // Predicated region
        $region33: #{tpu_custom_call.1} parent=27 // pred_check
          %p254 = pneg %p211
        $region34: #{tpu_custom_call.1} parent=27 // pred_check_branch
          %256 = sbr.rel (%p254) target = $region36
        $region35: #{tpu_custom_call.1} parent=27 // pred_region
          %v257 = vld [vmem:[#allocation2] sm:$0xff]
          %v258 = vsel %vm252, %v257, 0.0
          %259 = vadd.xlane.f32.xlu0 %v258
          %v260 = vpop.xlane.xlu0 %259
          %v261 = vrot.slane %v260, 4
          %v262 = vadd.f32 %v260, %v261
          %v263 = vrot.slane %v262, 2
          %v264 = vadd.f32 %v262, %v263
          %v265 = vrot.slane %v264, 1
          %v266 = vadd.f32 %v264, %v265
          %s267 = vtos %v266
          %v268 = vrcp.pop 8.0
          %s269 = vtos %v268
          %s270 = smul.f32 %s267, %s269
          %vm271 = vcmp.eq.s32.totalorder %v245, 0
          %vm272 = vcmp.eq.s32.totalorder %v232, 0
          %vm273 = vmand %vm271, %vm272
          %v274 = vstv %s270
          %v275 = vsel %vm273, %v274, 0.0
          %276 = vst [vmem:[%s189] sm:$0xff] %v275
        $region36: #{tpu_custom_call.1} parent=27 // pred_fallthru
          _
        %s277 = sand.u32 %s100, 1
        %s278 = scalar_lea.sflag [#allocation4], %s277
        %s279 = sand.u32 %s100, 1
        %s280 = smul.addr %s279, 8
        %s281 = scalar_lea.vmem [#allocation3], %s280
        // Predicated region
        $region37: #{tpu_custom_call.1} parent=27 // pred_check
          %p282 = pneg %p110
        $region38: #{tpu_custom_call.1} parent=27 // pred_check_branch
          %284 = sbr.rel (%p282) target = $region40
        $region39: #{tpu_custom_call.1} parent=27 // pred_region
          %s286 = ssub.s32 128, 128
          %287 = vsyncadd %s278, %s286
          %s288 = smul.addr %s20, 128
          %s289 = scalar_lea.hbm %s2, %s288
          %s291 = sshll.u32 %s281, 4
          %s292 = int_to_ptr.vmem [resolvable:$true] %s291
          %294 = dma.vmem_to_hbm [thread:$0]  %s292, 128, %s289, %s278
        $region40: #{tpu_custom_call.1} parent=27 // pred_fallthru
          _
      $region28: #{tpu_custom_call.1} parent=5 // pred_fallthru
        _
      %p295 = scmp.le.s32.totalorder 2, %s11
      // Predicated region
      $region41: #{tpu_custom_call.1} parent=5 // pred_check
        %p296 = pneg %p295
      $region42: #{tpu_custom_call.1} parent=5 // pred_check_branch
        %298 = sbr.rel (%p296) target = $region44
      $region43: #{tpu_custom_call.1} parent=5 // pred_region
        %s299 = ssub.s32 %s11, 2
        // Predicated region
        $region45: #{tpu_custom_call.1} parent=43 // pred_check
          %p300 = pneg %p116
        $region46: #{tpu_custom_call.1} parent=43 // pred_check_branch
          %302 = sbr.rel (%p300) target = $region48
        $region47: #{tpu_custom_call.1} parent=43 // pred_region
          %s303 = sand.u32 %s101, 1
          %s304 = scalar_lea.sflag [#allocation4], %s303
          %s305 = sand.u32 %s101, 1
          %s306 = smul.addr %s305, 8
          %s307 = scalar_lea.vmem [#allocation3], %s306
          %308 = dma.done %s304, 128
        $region48: #{tpu_custom_call.1} parent=43 // pred_fallthru
          _
      $region44: #{tpu_custom_call.1} parent=5 // pred_fallthru
        _
    $region6: #{tpu_custom_call.1} parent=1 // loop_footer
      %s15 = sadd.s32 1, %s11
    $region7: #{tpu_custom_call.1} parent=1 // loop_footer_branch
      %10 = sbr.rel target = $region3
    $region8: #{tpu_custom_call.1} parent=1 // loop_exit
      _
    %309 = vsyncpa [#allocation4], 1
    %s310 = scalar_lea.sflag [#allocation4], 1
    %311 = vsyncpa %s310, 1

</llo_original>
